<compile_context>
chip_gen: v6e
topology: v6e:2x2x1
jax: 0.10.0
libtpu: 0.0.40
codegen_flags: <defaults>
</compile_context>

<pallas_src>
import jax
import jax.numpy as jnp
from jax.experimental import pallas as pl
from jax.experimental.pallas import tpu as pltpu


# --------------------------------------------------------------------------
# Kernel 1: fused GlobalAttention ("dot") + LSTM input projection.
#   gates_x[b, t] = softmax(q K^T masked) K @ W_top + q @ W_bot + bias
# Output is batch-major (B, Lq, 4H) with a lane-dense last dim (4H).
# --------------------------------------------------------------------------
def _coattn_proj_kernel(q_ref, k_ref, m_ref, wih_ref, b_ref, gx_ref):
    # q_ref: (B, Lq, H)  k_ref: (B, Lt, H)  m_ref: (B, Lt) int32 (1 == pad)
    # wih_ref: (2H, 4H)  b_ref: (1, 4H)     gx_ref: (B, Lq, 4H)
    q = q_ref[...].astype(jnp.float32)              # (B, Lq, H)
    k = k_ref[...].astype(jnp.float32)              # (B, Lt, H)
    mask = m_ref[...]                               # (B, Lt)

    B, Lq, H = q.shape

    # scores + masked softmax over the table (source) axis
    s = jnp.einsum('bqd,bkd->bqk', q, k,
                   preferred_element_type=jnp.float32)          # (B, Lq, Lt)
    s = jnp.where(mask[:, None, :] > 0, -1e30, s)               # finite mask (no NaN)
    s = s - jnp.max(s, axis=-1, keepdims=True)
    p = jnp.exp(s)
    p = p * pl.reciprocal(jnp.sum(p, axis=-1, keepdims=True), approx=True)

    ctx = jnp.einsum('bqk,bkd->bqd', p, k,
                     preferred_element_type=jnp.float32)        # (B, Lq, H)

    # fused input projection: emb = [ctx, q]  ->  gates_x = emb @ W_ih^T + b
    w_top = wih_ref[...][:H, :]                                 # (H, 4H) on ctx
    w_bot = wih_ref[...][H:, :]                                 # (H, 4H) on q

    ctx2 = ctx.reshape(B * Lq, H)
    q2 = q.reshape(B * Lq, H)
    gx = (jnp.dot(ctx2, w_top, preferred_element_type=jnp.float32)
          + jnp.dot(q2, w_bot, preferred_element_type=jnp.float32))   # (B*Lq, 4H)
    gx = gx.reshape(B, Lq, 4 * H) + b_ref[...]                  # broadcast (1, 4H)

    gx_ref[...] = gx.astype(gx_ref.dtype)


def co_attention_attn_proj(q_bm, t_bm, mask2, wih_t, bias):
    B, Lq, H = q_bm.shape
    Lt = t_bm.shape[1]
    return pl.pallas_call(
        _coattn_proj_kernel,
        out_shape=jax.ShapeDtypeStruct((B, Lq, 4 * H), jnp.float32),
        grid=(1,),
        in_specs=[
            pl.BlockSpec((B, Lq, H), lambda i: (0, 0, 0)),
            pl.BlockSpec((B, Lt, H), lambda i: (0, 0, 0)),
            pl.BlockSpec((B, Lt), lambda i: (0, 0)),
            pl.BlockSpec((2 * H, 4 * H), lambda i: (0, 0)),
            pl.BlockSpec((1, 4 * H), lambda i: (0, 0)),
        ],
        out_specs=pl.BlockSpec((B, Lq, 4 * H), lambda i: (0, 0, 0)),
        compiler_params=pltpu.CompilerParams(
            dimension_semantics=("arbitrary",)),
    )(q_bm, t_bm, mask2, wih_t, bias)


# --------------------------------------------------------------------------
# Kernel 2: recurrent part of the single-layer unidirectional LSTM.
# Grid axis = time blocks (sequential); T_BLK steps unrolled per grid step.
# gates_x already contains x @ W_ih^T + (b_ih + b_hh).
# PyTorch gate order: [input, forget, cell, output].
# --------------------------------------------------------------------------
def _lstm_kernel(gx_ref, whh_ref, len_ref, out_ref, hN_ref, cN_ref, h_sc, c_sc):
    tb = pl.program_id(0)
    H = h_sc.shape[-1]
    t_blk = gx_ref.shape[1]

    @pl.when(tb == 0)
    def _():
        h_sc[...] = jnp.zeros_like(h_sc)
        c_sc[...] = jnp.zeros_like(c_sc)

    gx = gx_ref[...]                     # (B, T_BLK, 4H), bias already folded in
    whh = whh_ref[...]                   # (H, 4H)
    lens = len_ref[...]                  # (B, 1) int32
    t0 = tb * t_blk

    h = h_sc[...]                        # (B, H)
    c = c_sc[...]                        # (B, H)

    for tt in range(t_blk):              # static unroll (small T_BLK)
        gates = gx[:, tt, :] + jnp.dot(h, whh,
                                       preferred_element_type=jnp.float32)   # (B, 4H)
        i = jax.nn.sigmoid(gates[:, 0 * H:1 * H])
        f = jax.nn.sigmoid(gates[:, 1 * H:2 * H])
        g = jnp.tanh(gates[:, 2 * H:3 * H])
        o = jax.nn.sigmoid(gates[:, 3 * H:4 * H])

        c_new = f * c + i * g
        h_new = o * jnp.tanh(c_new)

        # packed-sequence semantics: past a sequence's length the state is
        # frozen and the unpadded output is zero.
        valid = lens > (t0 + tt)                          # (B, 1) bool
        c = jnp.where(valid, c_new, c)
        h = jnp.where(valid, h_new, h)
        out_ref[tt] = jnp.where(valid, h, 0.0).astype(out_ref.dtype)

    h_sc[...] = h
    c_sc[...] = c

    @pl.when(tb == pl.num_programs(0) - 1)
    def _():
        hN_ref[0] = h.astype(hN_ref.dtype)
        cN_ref[0] = c.astype(cN_ref.dtype)


def lstm_forward(gates_x, lengths, whh_t):
    B, Lq, fourH = gates_x.shape
    H = whh_t.shape[0]
    t_blk = 8 if (Lq % 8 == 0) else Lq          # keep sublane-aligned blocks
    n_tb = Lq // t_blk

    out_shapes = (jax.ShapeDtypeStruct((Lq, B, H), jnp.float32),
                  jax.ShapeDtypeStruct((1, B, H), jnp.float32),
                  jax.ShapeDtypeStruct((1, B, H), jnp.float32))
    return pl.pallas_call(
        _lstm_kernel,
        out_shape=out_shapes,
        grid=(n_tb,),
        in_specs=[
            pl.BlockSpec((B, t_blk, fourH), lambda tb: (0, tb, 0)),
            pl.BlockSpec((H, fourH), lambda tb: (0, 0)),
            pl.BlockSpec((B, 1), lambda tb: (0, 0)),
        ],
        out_specs=(
            pl.BlockSpec((t_blk, B, H), lambda tb: (tb, 0, 0)),
            pl.BlockSpec((1, B, H), lambda tb: (0, 0, 0)),
            pl.BlockSpec((1, B, H), lambda tb: (0, 0, 0)),
        ),
        scratch_shapes=[pltpu.VMEM((B, H), jnp.float32),
                        pltpu.VMEM((B, H), jnp.float32)],
        compiler_params=pltpu.CompilerParams(
            dimension_semantics=("arbitrary",)),
    )(gates_x, whh_t, lengths)


# --------------------------------------------------------------------------
# Full CoAttention.forward
# --------------------------------------------------------------------------
def co_attention_forward(q_all, lengths, tbl_enc, tbl_mask, lstm_params):
    """q_all: (Lq, B, H), tbl_enc: (Lt, B, H), tbl_mask: (B, Lt) (1 = pad),
    lengths: (B, 1) int32 question lengths. Returns ((h_n, c_n), outputs)."""
    w_ih, w_hh, b_ih, b_hh = lstm_params

    # glue: layout plumbing only (inputs are time-major per the module contract)
    q_bm = jnp.transpose(q_all, (1, 0, 2))          # (B, Lq, H)
    t_bm = jnp.transpose(tbl_enc, (1, 0, 2))        # (B, Lt, H)
    mask2 = tbl_mask.astype(jnp.int32)              # (B, Lt)

    wih_t = jnp.transpose(w_ih)                     # (2H, 4H)
    whh_t = jnp.transpose(w_hh)                     # (H, 4H)
    bias = (b_ih + b_hh)[None, :]                   # (1, 4H)

    # fused attention + LSTM input projection -> lane-dense (B, Lq, 4H)
    gates_x = co_attention_attn_proj(q_bm, t_bm, mask2, wih_t, bias)

    outputs, h_n, c_n = lstm_forward(gates_x, lengths, whh_t)
    return (h_n, c_n), outputs


if __name__ == "__main__":
    B, Lq, Lt, H = 2, 8, 8, 32

    key = jax.random.PRNGKey(0)
    k1, k2, k3, k4, k5, k6 = jax.random.split(key, 6)

    q_all = jax.random.normal(k1, (Lq, B, H), jnp.float32)
    tbl_enc = jax.random.normal(k2, (Lt, B, H), jnp.float32)

    # table mask: batch 0 has all 8 columns valid, batch 1 only 5
    tbl_valid = jnp.array([8, 5], jnp.int32)
    tbl_mask = (jnp.arange(Lt)[None, :] >= tbl_valid[:, None]).astype(jnp.int32)

    # question lengths (sorted descending, as pack() requires)
    lengths = jnp.array([[8], [6]], jnp.int32)

    # deterministic LSTM parameters (PyTorch default uniform(-1/sqrt(H), 1/sqrt(H)))
    bound = 1.0 / float(jnp.sqrt(jnp.float32(H)))
    w_ih = jax.random.uniform(k3, (4 * H, 2 * H), jnp.float32, -bound, bound)
    w_hh = jax.random.uniform(k4, (4 * H, H), jnp.float32, -bound, bound)
    b_ih = jax.random.uniform(k5, (4 * H,), jnp.float32, -bound, bound)
    b_hh = jax.random.uniform(k6, (4 * H,), jnp.float32, -bound, bound)

    (h_n, c_n), outputs = co_attention_forward(
        q_all, lengths, tbl_enc, tbl_mask, (w_ih, w_hh, b_ih, b_hh))
    jax.block_until_ready((h_n, c_n, outputs))

    assert outputs.shape == (Lq, B, H)
    assert h_n.shape == (1, B, H) and c_n.shape == (1, B, H)
    assert bool(jnp.all(jnp.isfinite(outputs)))
    assert bool(jnp.all(jnp.isfinite(h_n))) and bool(jnp.all(jnp.isfinite(c_n)))
    # padded question positions must be zero (pack/unpack semantics)
    assert bool(jnp.all(outputs[6:, 1, :] == 0.0))
    # final hidden of batch 0 (full length) must equal its last output row
    assert bool(jnp.allclose(h_n[0, 0], outputs[-1, 0], atol=1e-5))

    # TODO(synk): weight_dropout / multi-layer / bidirectional RNN variants not
    # implemented (this config uses LSTM, 1 layer, unidirectional, dropout=0).
    print("KERNEL_OK")
</pallas_src>

<mosaic_0001>
module attributes {stable_mosaic.version = 11 : i64} {
  func.func @_coattn_proj_kernel(%arg0: i32, %arg1: memref<2x8x32xf32, #tpu.memory_space<vmem>>, %arg2: memref<2x8x32xf32, #tpu.memory_space<vmem>>, %arg3: memref<2x8xi32, #tpu.memory_space<vmem>>, %arg4: memref<64x128xf32, #tpu.memory_space<vmem>>, %arg5: memref<1x128xf32, #tpu.memory_space<vmem>>, %arg6: memref<2x8x128xf32, #tpu.memory_space<vmem>>) attributes {dimension_semantics = [#tpu.dimension_semantics<arbitrary>], iteration_bounds = array<i64: 1>, scalar_prefetch = 0 : i64, scratch_operands = 0 : i64, tpu.core_type = #tpu.core_type<tc>, window_params = [{pipeline_mode = #tpu.pipeline_mode<synchronous>, transform_indices = @transform_0, window_bounds = array<i64: 2, 8, 32>}, {pipeline_mode = #tpu.pipeline_mode<synchronous>, transform_indices = @transform_1, window_bounds = array<i64: 2, 8, 32>}, {pipeline_mode = #tpu.pipeline_mode<synchronous>, transform_indices = @transform_2, window_bounds = array<i64: 2, 8>}, {pipeline_mode = #tpu.pipeline_mode<synchronous>, transform_indices = @transform_3, window_bounds = array<i64: 64, 128>}, {pipeline_mode = #tpu.pipeline_mode<synchronous>, transform_indices = @transform_4, window_bounds = array<i64: 1, 128>}, {pipeline_mode = #tpu.pipeline_mode<synchronous>, transform_indices = @transform_5, window_bounds = array<i64: 2, 8, 128>}]} {
    %c0 = arith.constant 0 : index
    %c0_0 = arith.constant 0 : index
    %c0_1 = arith.constant 0 : index
    %0 = vector.load %arg1[%c0, %c0_0, %c0_1] : memref<2x8x32xf32, #tpu.memory_space<vmem>>, vector<2x8x32xf32>
    %c0_2 = arith.constant 0 : index
    %c0_3 = arith.constant 0 : index
    %c0_4 = arith.constant 0 : index
    %1 = vector.load %arg2[%c0_2, %c0_3, %c0_4] : memref<2x8x32xf32, #tpu.memory_space<vmem>>, vector<2x8x32xf32>
    %c0_5 = arith.constant 0 : index
    %c0_6 = arith.constant 0 : index
    %2 = vector.load %arg3[%c0_5, %c0_6] : memref<2x8xi32, #tpu.memory_space<vmem>>, vector<2x8xi32>
    "tpu.trace_start"() <{level = 10 : i32, message = "bqd,bkd->bqk"}> : () -> ()
    %cst = arith.constant dense<0.000000e+00> : vector<2x8x8xf32>
    %3 = tpu.matmul %0, %1, %cst {dimension_numbers = #tpu.dot_dimension_numbers<[2], [2], [1], [1], [0, 0, 0, 1, 1, 1], [0], [0]>} : vector<2x8x32xf32>, vector<2x8x32xf32>, vector<2x8x8xf32> -> vector<2x8x8xf32>
    "tpu.trace_stop"() : () -> ()
    %4 = vector.shape_cast %2 : vector<2x8xi32> to vector<2x1x8xi32>
    %c0_i32 = arith.constant 0 : i32
    %5 = vector.broadcast %c0_i32 : i32 to vector<2x1x8xi32>
    %6 = arith.cmpi sgt, %4, %5 : vector<2x1x8xi32>
    %cst_7 = arith.constant -1.000000e+30 : f32
    %7 = vector.shape_cast %6 : vector<2x1x8xi1> to vector<2x1x8xi1>
    %8 = vector.broadcast %7 : vector<2x1x8xi1> to vector<2x8x8xi1>
    %9 = vector.broadcast %cst_7 : f32 to vector<2x8x8xf32>
    %10 = arith.select %8, %9, %3 : vector<2x8x8xi1>, vector<2x8x8xf32>
    %cst_8 = arith.constant dense<0xFF800000> : vector<2x8xf32>
    %11 = vector.multi_reduction <maximumf>, %10, %cst_8 [2] : vector<2x8x8xf32> to vector<2x8xf32>
    %12 = vector.shape_cast %11 : vector<2x8xf32> to vector<2x8x1xf32>
    %13 = vector.broadcast %12 : vector<2x8x1xf32> to vector<2x8x8xf32>
    %14 = arith.subf %10, %13 : vector<2x8x8xf32>
    %15 = math.exp %14 : vector<2x8x8xf32>
    %cst_9 = arith.constant dense<0.000000e+00> : vector<2x8xf32>
    %16 = vector.multi_reduction <add>, %15, %cst_9 [2] : vector<2x8x8xf32> to vector<2x8xf32>
    %17 = vector.shape_cast %16 : vector<2x8xf32> to vector<2x8x1xf32>
    %18 = tpu.reciprocal %17 {approx = true} : vector<2x8x1xf32> -> vector<2x8x1xf32>
    %19 = vector.broadcast %18 : vector<2x8x1xf32> to vector<2x8x8xf32>
    %20 = arith.mulf %15, %19 : vector<2x8x8xf32>
    "tpu.trace_start"() <{level = 10 : i32, message = "bqk,bkd->bqd"}> : () -> ()
    %cst_10 = arith.constant dense<0.000000e+00> : vector<2x8x32xf32>
    %21 = tpu.matmul %20, %1, %cst_10 {dimension_numbers = #tpu.dot_dimension_numbers<[2], [1], [1], [2], [0, 0, 0, 1, 1, 2], [0], [0]>} : vector<2x8x8xf32>, vector<2x8x32xf32>, vector<2x8x32xf32> -> vector<2x8x32xf32>
    "tpu.trace_stop"() : () -> ()
    %c0_11 = arith.constant 0 : index
    %c0_12 = arith.constant 0 : index
    %22 = vector.load %arg4[%c0_11, %c0_12] : memref<64x128xf32, #tpu.memory_space<vmem>>, vector<64x128xf32>
    %23 = vector.extract_strided_slice %22 {offsets = [0, 0], sizes = [32, 128], strides = [1, 1]} : vector<64x128xf32> to vector<32x128xf32>
    %c0_13 = arith.constant 0 : index
    %c0_14 = arith.constant 0 : index
    %24 = vector.load %arg4[%c0_13, %c0_14] : memref<64x128xf32, #tpu.memory_space<vmem>>, vector<64x128xf32>
    %25 = vector.extract_strided_slice %24 {offsets = [32, 0], sizes = [32, 128], strides = [1, 1]} : vector<64x128xf32> to vector<32x128xf32>
    %26 = vector.shape_cast %21 : vector<2x8x32xf32> to vector<16x32xf32>
    %27 = vector.shape_cast %0 : vector<2x8x32xf32> to vector<16x32xf32>
    %cst_15 = arith.constant dense<0.000000e+00> : vector<16x128xf32>
    %28 = tpu.matmul %26, %23, %cst_15 {dimension_numbers = #tpu.dot_dimension_numbers<[1], [0], [0], [1], [0, 0, 1, 1], [], []>} : vector<16x32xf32>, vector<32x128xf32>, vector<16x128xf32> -> vector<16x128xf32>
    %cst_16 = arith.constant dense<0.000000e+00> : vector<16x128xf32>
    %29 = tpu.matmul %27, %25, %cst_16 {dimension_numbers = #tpu.dot_dimension_numbers<[1], [0], [0], [1], [0, 0, 1, 1], [], []>} : vector<16x32xf32>, vector<32x128xf32>, vector<16x128xf32> -> vector<16x128xf32>
    %30 = arith.addf %28, %29 : vector<16x128xf32>
    %31 = vector.shape_cast %30 : vector<16x128xf32> to vector<2x8x128xf32>
    %c0_17 = arith.constant 0 : index
    %c0_18 = arith.constant 0 : index
    %32 = vector.load %arg5[%c0_17, %c0_18] : memref<1x128xf32, #tpu.memory_space<vmem>>, vector<1x128xf32>
    %33 = vector.shape_cast %32 : vector<1x128xf32> to vector<1x1x128xf32>
    %34 = vector.broadcast %33 : vector<1x1x128xf32> to vector<2x8x128xf32>
    %35 = arith.addf %31, %34 : vector<2x8x128xf32>
    %c0_19 = arith.constant 0 : index
    %c0_20 = arith.constant 0 : index
    %c0_21 = arith.constant 0 : index
    %36 = vector.load %arg6[%c0_19, %c0_20, %c0_21] : memref<2x8x128xf32, #tpu.memory_space<vmem>>, vector<2x8x128xf32>
    tpu.vector_store %arg6[%c0_19, %c0_20, %c0_21], %35 {strides = array<i32>} : memref<2x8x128xf32, #tpu.memory_space<vmem>>, vector<2x8x128xf32>,
    return
  }
  func.func @transform_0(%arg0: i32) -> (i32, i32, i32) {
    %c0_i32 = arith.constant 0 : i32
    %c0_i32_0 = arith.constant 0 : i32
    %c0_i32_1 = arith.constant 0 : i32
    %c0_i32_2 = arith.constant 0 : i32
    return %c0_i32, %c0_i32_0, %c0_i32_1 : i32, i32, i32
  }
  func.func @transform_1(%arg0: i32) -> (i32, i32, i32) {
    %c0_i32 = arith.constant 0 : i32
    %c0_i32_0 = arith.constant 0 : i32
    %c0_i32_1 = arith.constant 0 : i32
    %c0_i32_2 = arith.constant 0 : i32
    return %c0_i32, %c0_i32_0, %c0_i32_1 : i32, i32, i32
  }
  func.func @transform_2(%arg0: i32) -> (i32, i32) {
    %c0_i32 = arith.constant 0 : i32
    %c0_i32_0 = arith.constant 0 : i32
    %c0_i32_1 = arith.constant 0 : i32
    return %c0_i32, %c0_i32_0 : i32, i32
  }
  func.func @transform_3(%arg0: i32) -> (i32, i32) {
    %c0_i32 = arith.constant 0 : i32
    %c0_i32_0 = arith.constant 0 : i32
    %c0_i32_1 = arith.constant 0 : i32
    return %c0_i32, %c0_i32_0 : i32, i32
  }
  func.func @transform_4(%arg0: i32) -> (i32, i32) {
    %c0_i32 = arith.constant 0 : i32
    %c0_i32_0 = arith.constant 0 : i32
    %c0_i32_1 = arith.constant 0 : i32
    return %c0_i32, %c0_i32_0 : i32, i32
  }
  func.func @transform_5(%arg0: i32) -> (i32, i32, i32) {
    %c0_i32 = arith.constant 0 : i32
    %c0_i32_0 = arith.constant 0 : i32
    %c0_i32_1 = arith.constant 0 : i32
    %c0_i32_2 = arith.constant 0 : i32
    return %c0_i32, %c0_i32_0, %c0_i32_1 : i32, i32, i32
  }
}

</mosaic_0001>

<llo_original>
// kernel: tpu_custom_call.1
$region0: #{tpu_custom_call.1}
  #allocation0 [shape = 'u32[]', space=smem, size = 0x4, offset = 0x4, fixed_abs, tag = 'smem constant byte address 0x4 - core index']
  #allocation1 [shape = 'u32[144,128]{1,0:T(1,128)}', space=vmem, size = 0x12000, scoped, tag = 'internal scratch']
  %s0 = inlined_call_operand.hbm [shape: f32[2,8,32], index: 0, kind: input, shape index: {}]
  %s1 = inlined_call_operand.hbm [shape: f32[2,8,32], index: 1, kind: input, shape index: {}]
  %s2 = inlined_call_operand.vmem [shape: s32[2,8], index: 2, kind: input, shape index: {}]
  %s3 = inlined_call_operand.hbm [shape: f32[64,128], index: 3, kind: input, shape index: {}]
  %s4 = inlined_call_operand.vmem [shape: f32[1,128], index: 4, kind: input, shape index: {}]
  %s5 = inlined_call_operand.hbm [shape: f32[2,8,128], index: 5, kind: output, shape index: {}]
  %s6 = sld [smem:[#allocation0]]
  $region42: #{tpu_custom_call.1} parent=0
    _
  %s8 = ssub.s32 1, %s6
  %s9 = scalar_select 0, %s8, %s6
  $region1: #{tpu_custom_call.1} parent=0
    #allocation2 [shape = 'u8[8192]{0}', space=vmem, size = 0x2000, scoped, tag = 'input window, operand 0, single buffered']
    #allocation3 [shape = 's32[1]{0}', space=sflag, size = 0x4, scoped, tag = 'scoped memory for tpu_custom_call.1']
    #allocation4 [shape = 's32[1]{0}', space=sflag, size = 0x4, scoped, tag = 'scoped memory for tpu_custom_call.1']
    #allocation5 [shape = 'u8[8192]{0}', space=vmem, size = 0x2000, scoped, tag = 'input window, operand 1, single buffered']
    #allocation6 [shape = 's32[1]{0}', space=sflag, size = 0x4, scoped, tag = 'scoped memory for tpu_custom_call.1']
    #allocation7 [shape = 'u8[32768]{0}', space=vmem, size = 0x8000, scoped, tag = 'input window, operand 3, single buffered']
    #allocation8 [shape = 'u8[8192]{0}', space=vmem, size = 0x2000, scoped, tag = 'output window, operand 0, single buffered']
    %10 = vsyncpa [#allocation3], 0
    %11 = vsyncpa [#allocation6], 0
    %12 = vsyncpa [#allocation4], 0
    // Predicated region
    $region2: #{tpu_custom_call.1} parent=1 // pred_check
      _
    $region3: #{tpu_custom_call.1} parent=1 // pred_check_branch
      %14 = sbr.rel (0) target = $region5
    $region4: #{tpu_custom_call.1} parent=1 // pred_region
      %s16 = ssub.s32 256, 256
      %17 = vsyncadd [#allocation3], %s16
      %s18 = sshll.u32 [#allocation2], 4
      %s19 = int_to_ptr.vmem [resolvable:$true] %s18
      %24 = dma.hbm_to_vmem [thread:$0]  %s0, 256, %s19, [#allocation3], 128, 128, 8
    $region5: #{tpu_custom_call.1} parent=1 // pred_fallthru
      _
    // Predicated region
    $region6: #{tpu_custom_call.1} parent=1 // pred_check
      _
    $region7: #{tpu_custom_call.1} parent=1 // pred_check_branch
      %26 = sbr.rel (0) target = $region9
    $region8: #{tpu_custom_call.1} parent=1 // pred_region
      %s28 = ssub.s32 256, 256
      %29 = vsyncadd [#allocation6], %s28
      %s30 = sshll.u32 [#allocation5], 4
      %s31 = int_to_ptr.vmem [resolvable:$true] %s30
      %36 = dma.hbm_to_vmem [thread:$0]  %s1, 256, %s31, [#allocation6], 128, 128, 8
    $region9: #{tpu_custom_call.1} parent=1 // pred_fallthru
      _
    // Predicated region
    $region10: #{tpu_custom_call.1} parent=1 // pred_check
      _
    $region11: #{tpu_custom_call.1} parent=1 // pred_check_branch
      %38 = sbr.rel (0) target = $region13
    $region12: #{tpu_custom_call.1} parent=1 // pred_region
      _
    $region13: #{tpu_custom_call.1} parent=1 // pred_fallthru
      _
    // Predicated region
    $region14: #{tpu_custom_call.1} parent=1 // pred_check
      _
    $region15: #{tpu_custom_call.1} parent=1 // pred_check_branch
      %40 = sbr.rel (0) target = $region17
    $region16: #{tpu_custom_call.1} parent=1 // pred_region
      %s42 = ssub.s32 1024, 1024
      %43 = vsyncadd [#allocation6], %s42
      %s44 = sshll.u32 [#allocation7], 4
      %s45 = int_to_ptr.vmem [resolvable:$true] %s44
      %50 = dma.hbm_to_vmem [thread:$0]  %s3, 1024, %s45, [#allocation6], 128, 128, 8
    $region17: #{tpu_custom_call.1} parent=1 // pred_fallthru
      _
    // Predicated region
    $region18: #{tpu_custom_call.1} parent=1 // pred_check
      _
    $region19: #{tpu_custom_call.1} parent=1 // pred_check_branch
      %52 = sbr.rel (0) target = $region21
    $region20: #{tpu_custom_call.1} parent=1 // pred_region
      _
    $region21: #{tpu_custom_call.1} parent=1 // pred_fallthru
      _
    // Predicated region
    $region22: #{tpu_custom_call.1} parent=1 // pred_check
      _
    $region23: #{tpu_custom_call.1} parent=1 // pred_check_branch
      %54 = sbr.rel (0) target = $region25
    $region24: #{tpu_custom_call.1} parent=1 // pred_region
      %55 = dma.done [#allocation3], 256
    $region25: #{tpu_custom_call.1} parent=1 // pred_fallthru
      _
    // Predicated region
    $region26: #{tpu_custom_call.1} parent=1 // pred_check
      _
    $region27: #{tpu_custom_call.1} parent=1 // pred_check_branch
      %57 = sbr.rel (0) target = $region29
    $region28: #{tpu_custom_call.1} parent=1 // pred_region
      %58 = dma.done [#allocation6], 256
    $region29: #{tpu_custom_call.1} parent=1 // pred_fallthru
      _
    // Predicated region
    $region30: #{tpu_custom_call.1} parent=1 // pred_check
      _
    $region31: #{tpu_custom_call.1} parent=1 // pred_check_branch
      %60 = sbr.rel (0) target = $region33
    $region32: #{tpu_custom_call.1} parent=1 // pred_region
      %61 = dma.done [#allocation6], 1024
    $region33: #{tpu_custom_call.1} parent=1 // pred_fallthru
      _
    %v62 = vld [vmem:[#allocation2] sm:$0xff]
    %v63 = vld [vmem:[#allocation2 + $0x8] sm:$0xff]
    %v64 = vld [vmem:[#allocation5] sm:$0xff]
    %v65 = vld [vmem:[#allocation5 + $0x8] sm:$0xff]
    %v66 = vld [vmem:[%s2] sm:$0x3]
    %vm67 = vcmask 261120
    %v69 = vsel %vm67, %v62, 0
    %v72 = vsel %vm67, %v64, 0
    %74 = vmatprep.subr.mxu0 0.0
    %75 = vmatpush1.xpose.msra.mxu0 0.0
    %76 = vmatprep.subr.mxu0 0.0
    %77 = vmatpush1.xpose.msra.mxu0 0.0
    %78 = vmatprep.subr.mxu0 0.0
    %79 = vmatpush1.xpose.msra.mxu0 0.0
    %80 = vmatprep.subr.mxu0 0.0
    %81 = vmatpush1.xpose.msra.mxu0 0.0
    %82 = vmatprep.subr.mxu0 0.0
    %83 = vmatpush1.xpose.msra.mxu0 0.0
    %84 = vmatprep.subr.mxu0 0.0
    %85 = vmatpush1.xpose.msra.mxu0 0.0
    %86 = vmatprep.subr.mxu0 0.0
    %87 = vmatpush1.xpose.msra.mxu0 0.0
    %88 = vmatprep.subr.mxu0 0.0
    %89 = vmatpush1.xpose.msra.mxu0 0.0
    %90 = vmatprep.subr.mxu0 0.0
    %91 = vmatpush1.xpose.msra.mxu0 0.0
    %92 = vmatprep.subr.mxu0 0.0
    %93 = vmatpush1.xpose.msra.mxu0 0.0
    %94 = vmatprep.subr.mxu0 0.0
    %95 = vmatpush1.xpose.msra.mxu0 0.0
    %96 = vmatprep.subr.mxu0 0.0
    %97 = vmatpush1.xpose.msra.mxu0 0.0
    %98 = vmatprep.subr.mxu0 0.0
    %99 = vmatpush1.xpose.msra.mxu0 0.0
    %100 = vmatprep.subr.mxu0 0.0
    %101 = vmatpush1.xpose.msra.mxu0 0.0
    %102 = vmatprep.subr.mxu0 0.0
    %103 = vmatpush1.xpose.msra.mxu0 0.0
    %104 = vmatprep.subr.mxu0 0.0
    %105 = vmatpush1.xpose.msra.mxu0 %v72
    %106 = vmatprep.subr.mxu0 0.0
    %107 = vmatpush2.xpose.msra.mxu0 0.0
    %108 = vmatprep.subr.mxu0 0.0
    %109 = vmatpush2.xpose.msra.mxu0 0.0
    %110 = vmatprep.subr.mxu0 0.0
    %111 = vmatpush2.xpose.msra.mxu0 0.0
    %112 = vmatprep.subr.mxu0 0.0
    %113 = vmatpush2.xpose.msra.mxu0 0.0
    %114 = vmatprep.subr.mxu0 0.0
    %115 = vmatpush2.xpose.msra.mxu0 0.0
    %116 = vmatprep.subr.mxu0 0.0
    %117 = vmatpush2.xpose.msra.mxu0 0.0
    %118 = vmatprep.subr.mxu0 0.0
    %119 = vmatpush2.xpose.msra.mxu0 0.0
    %120 = vmatprep.subr.mxu0 0.0
    %121 = vmatpush2.xpose.msra.mxu0 0.0
    %122 = vmatprep.subr.mxu0 0.0
    %123 = vmatpush2.xpose.msra.mxu0 0.0
    %124 = vmatprep.subr.mxu0 0.0
    %125 = vmatpush2.xpose.msra.mxu0 0.0
    %126 = vmatprep.subr.mxu0 0.0
    %127 = vmatpush2.xpose.msra.mxu0 0.0
    %128 = vmatprep.subr.mxu0 0.0
    %129 = vmatpush2.xpose.msra.mxu0 0.0
    %130 = vmatprep.subr.mxu0 0.0
    %131 = vmatpush2.xpose.msra.mxu0 0.0
    %132 = vmatprep.subr.mxu0 0.0
    %133 = vmatpush2.xpose.msra.mxu0 0.0
    %134 = vmatprep.subr.mxu0 0.0
    %135 = vmatpush2.xpose.msra.mxu0 0.0
    %136 = vmatprep.subr.mxu0 0.0
    %137 = vmatpush2.xpose.msra.mxu0 0.0
    %138 = vmatprep.mubr.f32.mxu0 0.0
    %139 = vmatmul.mubr.f32.gmra.mxu0 %v69
    %v140 = vpop.f32.mrf.mxu0
    %v141 = vadd.f32 0.0, %v140
    %v142 = vpop.f32.mrf.mxu0
    %143 = vdwg.mxu0
    %v145 = vsel %vm67, %v63, 0
    %v148 = vsel %vm67, %v65, 0
    %150 = vmatprep.subr.mxu0 0.0
    %151 = vmatpush1.xpose.msra.mxu0 0.0
    %152 = vmatprep.subr.mxu0 0.0
    %153 = vmatpush1.xpose.msra.mxu0 0.0
    %154 = vmatprep.subr.mxu0 0.0
    %155 = vmatpush1.xpose.msra.mxu0 0.0
    %156 = vmatprep.subr.mxu0 0.0
    %157 = vmatpush1.xpose.msra.mxu0 0.0
    %158 = vmatprep.subr.mxu0 0.0
    %159 = vmatpush1.xpose.msra.mxu0 0.0
    %160 = vmatprep.subr.mxu0 0.0
    %161 = vmatpush1.xpose.msra.mxu0 0.0
    %162 = vmatprep.subr.mxu0 0.0
    %163 = vmatpush1.xpose.msra.mxu0 0.0
    %164 = vmatprep.subr.mxu0 0.0
    %165 = vmatpush1.xpose.msra.mxu0 0.0
    %166 = vmatprep.subr.mxu0 0.0
    %167 = vmatpush1.xpose.msra.mxu0 0.0
    %168 = vmatprep.subr.mxu0 0.0
    %169 = vmatpush1.xpose.msra.mxu0 0.0
    %170 = vmatprep.subr.mxu0 0.0
    %171 = vmatpush1.xpose.msra.mxu0 0.0
    %172 = vmatprep.subr.mxu0 0.0
    %173 = vmatpush1.xpose.msra.mxu0 0.0
    %174 = vmatprep.subr.mxu0 0.0
    %175 = vmatpush1.xpose.msra.mxu0 0.0
    %176 = vmatprep.subr.mxu0 0.0
    %177 = vmatpush1.xpose.msra.mxu0 0.0
    %178 = vmatprep.subr.mxu0 0.0
    %179 = vmatpush1.xpose.msra.mxu0 0.0
    %180 = vmatprep.subr.mxu0 0.0
    %181 = vmatpush1.xpose.msra.mxu0 %v148
    %182 = vmatprep.subr.mxu0 0.0
    %183 = vmatpush2.xpose.msra.mxu0 0.0
    %184 = vmatprep.subr.mxu0 0.0
    %185 = vmatpush2.xpose.msra.mxu0 0.0
    %186 = vmatprep.subr.mxu0 0.0
    %187 = vmatpush2.xpose.msra.mxu0 0.0
    %188 = vmatprep.subr.mxu0 0.0
    %189 = vmatpush2.xpose.msra.mxu0 0.0
    %190 = vmatprep.subr.mxu0 0.0
    %191 = vmatpush2.xpose.msra.mxu0 0.0
    %192 = vmatprep.subr.mxu0 0.0
    %193 = vmatpush2.xpose.msra.mxu0 0.0
    %194 = vmatprep.subr.mxu0 0.0
    %195 = vmatpush2.xpose.msra.mxu0 0.0
    %196 = vmatprep.subr.mxu0 0.0
    %197 = vmatpush2.xpose.msra.mxu0 0.0
    %198 = vmatprep.subr.mxu0 0.0
    %199 = vmatpush2.xpose.msra.mxu0 0.0
    %200 = vmatprep.subr.mxu0 0.0
    %201 = vmatpush2.xpose.msra.mxu0 0.0
    %202 = vmatprep.subr.mxu0 0.0
    %203 = vmatpush2.xpose.msra.mxu0 0.0
    %204 = vmatprep.subr.mxu0 0.0
    %205 = vmatpush2.xpose.msra.mxu0 0.0
    %206 = vmatprep.subr.mxu0 0.0
    %207 = vmatpush2.xpose.msra.mxu0 0.0
    %208 = vmatprep.subr.mxu0 0.0
    %209 = vmatpush2.xpose.msra.mxu0 0.0
    %210 = vmatprep.subr.mxu0 0.0
    %211 = vmatpush2.xpose.msra.mxu0 0.0
    %212 = vmatprep.subr.mxu0 0.0
    %213 = vmatpush2.xpose.msra.mxu0 0.0
    %214 = vmatprep.mubr.f32.mxu0 0.0
    %215 = vmatmul.mubr.f32.gmra.mxu0 %v145
    %v216 = vpop.f32.mrf.mxu0
    %v217 = vadd.f32 0.0, %v216
    %v218 = vpop.f32.mrf.mxu0
    %219 = vdwg.mxu0
    %v221 = vunpack.c.l.s4 1966171168
    %v222 = vunpack.c.0.s8 %v221
    %v223 = vlaneseq
    %v224 = vshrl.u32 %v223, 7
    %v225 = vsub.s32 %v222, %v224
    %v226 = vrot.slane %v66, %v225
    %v227 = vcombine.high %v226, %v226
    %v229 = vunpack.c.l.s4 1966171168
    %v230 = vunpack.c.0.s8 %v229
    %v231 = vlaneseq
    %v232 = vshrl.u32 %v231, 7
    %v233 = vsub.s32 %v230, %v232
    %v234 = vrot.slane %v226, %v233
    %v236 = vunpack.c.l.s4 1966171168
    %v237 = vunpack.c.0.s8 %v236
    %v238 = vlaneseq
    %v239 = vshrl.u32 %v238, 7
    %v240 = vsub.s32 %v237, %v239
    %v241 = vrot.slane %v227, %v240
    %vm242 = vcmp.gt.s32.totalorder %v234, 0
    %vm243 = vcmp.gt.s32.totalorder %v241, 0
    %v244 = vsel %vm242, 1, 0
    %v245 = vsel %vm243, 1, 0
    %v246 = vlaneseq
    %v247 = vshrl.u32 %v246, 7
    %v248 = vsub.s32 0, %v247
    %v249 = vrot.slane %v244, %v248
    %v250 = vlaneseq
    %v251 = vshrl.u32 %v250, 7
    %v252 = vsub.s32 0, %v251
    %v253 = vrot.slane %v245, %v252
    %vm254 = vcmp.eq.s32.totalorder %v249, 1
    %vm255 = vcmp.eq.s32.totalorder %v253, 1
    %v256 = vsel %vm254, -1e+30, %v141
    %v257 = vsel %vm255, -1e+30, %v217
    %vm258 = vcmask 64512
    %v259 = vsel %vm258, %v256, -inf
    %260 = vmax.xlane.f32.xlu0 %v259
    %v261 = vpop.xlane.xlu0 %260
    %v262 = vsel %vm258, %v257, -inf
    %263 = vmax.xlane.f32.xlu0 %v262
    %v264 = vpop.xlane.xlu0 %263
    %v265 = vsub.f32 %v256, %v261
    %v266 = vsub.f32 %v257, %v264
    %v267 = vmul.f32 %v265, 1.442695
    %v268 = vpow.pop %v267
    %v269 = vmul.f32 %v266, 1.442695
    %v270 = vpow.pop %v269
    %v271 = vsel %vm258, %v268, 0.0
    %272 = vadd.xlane.f32.xlu0 %v271
    %v273 = vpop.xlane.xlu0 %272
    %v274 = vsel %vm258, %v270, 0.0
    %275 = vadd.xlane.f32.xlu0 %v274
    %v276 = vpop.xlane.xlu0 %275
    %v277 = vrcp.pop %v273
    %v278 = vrcp.pop %v276
    %v279 = vmul.f32 %v268, %v277
    %v280 = vmul.f32 %v270, %v278
    %v282 = vsel %vm258, %v279, 0
    %284 = vmatprep.subr.mxu0 0.0
    %285 = vmatpush1.msra.mxu0 0.0
    %286 = vmatprep.subr.mxu0 0.0
    %287 = vmatpush1.msra.mxu0 0.0
    %288 = vmatprep.subr.mxu0 0.0
    %289 = vmatpush1.msra.mxu0 0.0
    %290 = vmatprep.subr.mxu0 0.0
    %291 = vmatpush1.msra.mxu0 0.0
    %292 = vmatprep.subr.mxu0 0.0
    %293 = vmatpush1.msra.mxu0 0.0
    %294 = vmatprep.subr.mxu0 0.0
    %295 = vmatpush1.msra.mxu0 0.0
    %296 = vmatprep.subr.mxu0 0.0
    %297 = vmatpush1.msra.mxu0 0.0
    %298 = vmatprep.subr.mxu0 0.0
    %299 = vmatpush1.msra.mxu0 0.0
    %300 = vmatprep.subr.mxu0 0.0
    %301 = vmatpush1.msra.mxu0 0.0
    %302 = vmatprep.subr.mxu0 0.0
    %303 = vmatpush1.msra.mxu0 0.0
    %304 = vmatprep.subr.mxu0 0.0
    %305 = vmatpush1.msra.mxu0 0.0
    %306 = vmatprep.subr.mxu0 0.0
    %307 = vmatpush1.msra.mxu0 0.0
    %308 = vmatprep.subr.mxu0 0.0
    %309 = vmatpush1.msra.mxu0 0.0
    %310 = vmatprep.subr.mxu0 0.0
    %311 = vmatpush1.msra.mxu0 0.0
    %312 = vmatprep.subr.mxu0 0.0
    %313 = vmatpush1.msra.mxu0 0.0
    %314 = vmatprep.subr.mxu0 0.0
    %315 = vmatpush1.msra.mxu0 %v64
    %316 = vmatprep.subr.mxu0 0.0
    %317 = vmatpush2.msra.mxu0 0.0
    %318 = vmatprep.subr.mxu0 0.0
    %319 = vmatpush2.msra.mxu0 0.0
    %320 = vmatprep.subr.mxu0 0.0
    %321 = vmatpush2.msra.mxu0 0.0
    %322 = vmatprep.subr.mxu0 0.0
    %323 = vmatpush2.msra.mxu0 0.0
    %324 = vmatprep.subr.mxu0 0.0
    %325 = vmatpush2.msra.mxu0 0.0
    %326 = vmatprep.subr.mxu0 0.0
    %327 = vmatpush2.msra.mxu0 0.0
    %328 = vmatprep.subr.mxu0 0.0
    %329 = vmatpush2.msra.mxu0 0.0
    %330 = vmatprep.subr.mxu0 0.0
    %331 = vmatpush2.msra.mxu0 0.0
    %332 = vmatprep.subr.mxu0 0.0
    %333 = vmatpush2.msra.mxu0 0.0
    %334 = vmatprep.subr.mxu0 0.0
    %335 = vmatpush2.msra.mxu0 0.0
    %336 = vmatprep.subr.mxu0 0.0
    %337 = vmatpush2.msra.mxu0 0.0
    %338 = vmatprep.subr.mxu0 0.0
    %339 = vmatpush2.msra.mxu0 0.0
    %340 = vmatprep.subr.mxu0 0.0
    %341 = vmatpush2.msra.mxu0 0.0
    %342 = vmatprep.subr.mxu0 0.0
    %343 = vmatpush2.msra.mxu0 0.0
    %344 = vmatprep.subr.mxu0 0.0
    %345 = vmatpush2.msra.mxu0 0.0
    %346 = vmatprep.subr.mxu0 0.0
    %347 = vmatpush2.msra.mxu0 0.0
    %348 = vmatprep.mubr.f32.mxu0 0.0
    %349 = vmatmul.mubr.f32.gmra.mxu0 %v282
    %v350 = vpop.f32.mrf.mxu0
    %v351 = vadd.f32 0.0, %v350
    %v352 = vpop.f32.mrf.mxu0
    %353 = vdwg.mxu0
    %v355 = vsel %vm258, %v280, 0
    %357 = vmatprep.subr.mxu0 0.0
    %358 = vmatpush1.msra.mxu0 0.0
    %359 = vmatprep.subr.mxu0 0.0
    %360 = vmatpush1.msra.mxu0 0.0
    %361 = vmatprep.subr.mxu0 0.0
    %362 = vmatpush1.msra.mxu0 0.0
    %363 = vmatprep.subr.mxu0 0.0
    %364 = vmatpush1.msra.mxu0 0.0
    %365 = vmatprep.subr.mxu0 0.0
    %366 = vmatpush1.msra.mxu0 0.0
    %367 = vmatprep.subr.mxu0 0.0
    %368 = vmatpush1.msra.mxu0 0.0
    %369 = vmatprep.subr.mxu0 0.0
    %370 = vmatpush1.msra.mxu0 0.0
    %371 = vmatprep.subr.mxu0 0.0
    %372 = vmatpush1.msra.mxu0 0.0
    %373 = vmatprep.subr.mxu0 0.0
    %374 = vmatpush1.msra.mxu0 0.0
    %375 = vmatprep.subr.mxu0 0.0
    %376 = vmatpush1.msra.mxu0 0.0
    %377 = vmatprep.subr.mxu0 0.0
    %378 = vmatpush1.msra.mxu0 0.0
    %379 = vmatprep.subr.mxu0 0.0
    %380 = vmatpush1.msra.mxu0 0.0
    %381 = vmatprep.subr.mxu0 0.0
    %382 = vmatpush1.msra.mxu0 0.0
    %383 = vmatprep.subr.mxu0 0.0
    %384 = vmatpush1.msra.mxu0 0.0
    %385 = vmatprep.subr.mxu0 0.0
    %386 = vmatpush1.msra.mxu0 0.0
    %387 = vmatprep.subr.mxu0 0.0
    %388 = vmatpush1.msra.mxu0 %v65
    %389 = vmatprep.subr.mxu0 0.0
    %390 = vmatpush2.msra.mxu0 0.0
    %391 = vmatprep.subr.mxu0 0.0
    %392 = vmatpush2.msra.mxu0 0.0
    %393 = vmatprep.subr.mxu0 0.0
    %394 = vmatpush2.msra.mxu0 0.0
    %395 = vmatprep.subr.mxu0 0.0
    %396 = vmatpush2.msra.mxu0 0.0
    %397 = vmatprep.subr.mxu0 0.0
    %398 = vmatpush2.msra.mxu0 0.0
    %399 = vmatprep.subr.mxu0 0.0
    %400 = vmatpush2.msra.mxu0 0.0
    %401 = vmatprep.subr.mxu0 0.0
    %402 = vmatpush2.msra.mxu0 0.0
    %403 = vmatprep.subr.mxu0 0.0
    %404 = vmatpush2.msra.mxu0 0.0
    %405 = vmatprep.subr.mxu0 0.0
    %406 = vmatpush2.msra.mxu0 0.0
    %407 = vmatprep.subr.mxu0 0.0
    %408 = vmatpush2.msra.mxu0 0.0
    %409 = vmatprep.subr.mxu0 0.0
    %410 = vmatpush2.msra.mxu0 0.0
    %411 = vmatprep.subr.mxu0 0.0
    %412 = vmatpush2.msra.mxu0 0.0
    %413 = vmatprep.subr.mxu0 0.0
    %414 = vmatpush2.msra.mxu0 0.0
    %415 = vmatprep.subr.mxu0 0.0
    %416 = vmatpush2.msra.mxu0 0.0
    %417 = vmatprep.subr.mxu0 0.0
    %418 = vmatpush2.msra.mxu0 0.0
    %419 = vmatprep.subr.mxu0 0.0
    %420 = vmatpush2.msra.mxu0 0.0
    %421 = vmatprep.mubr.f32.mxu0 0.0
    %422 = vmatmul.mubr.f32.gmra.mxu0 %v355
    %v423 = vpop.f32.mrf.mxu0
    %v424 = vadd.f32 0.0, %v423
    %v425 = vpop.f32.mrf.mxu0
    %426 = vdwg.mxu0
    %v427 = vld [vmem:[#allocation7] sm:$0xff]
    %v428 = vld [vmem:[#allocation7 + $0x8] sm:$0xff]
    %v429 = vld [vmem:[#allocation7 + $0x10] sm:$0xff]
    %v430 = vld [vmem:[#allocation7 + $0x18] sm:$0xff]
    %v431 = vld [vmem:[#allocation7 + $0x20] sm:$0xff]
    %v432 = vld [vmem:[#allocation7 + $0x28] sm:$0xff]
    %v433 = vld [vmem:[#allocation7 + $0x30] sm:$0xff]
    %v434 = vld [vmem:[#allocation7 + $0x38] sm:$0xff]
    %435 = vmatprep.subr.mxu0 0.0
    %436 = vmatpush1.msra.mxu0 0.0
    %437 = vmatprep.subr.mxu0 0.0
    %438 = vmatpush1.msra.mxu0 0.0
    %439 = vmatprep.subr.mxu0 0.0
    %440 = vmatpush1.msra.mxu0 0.0
    %441 = vmatprep.subr.mxu0 0.0
    %442 = vmatpush1.msra.mxu0 0.0
    %443 = vmatprep.subr.mxu0 0.0
    %444 = vmatpush1.msra.mxu0 0.0
    %445 = vmatprep.subr.mxu0 0.0
    %446 = vmatpush1.msra.mxu0 0.0
    %447 = vmatprep.subr.mxu0 0.0
    %448 = vmatpush1.msra.mxu0 0.0
    %449 = vmatprep.subr.mxu0 0.0
    %450 = vmatpush1.msra.mxu0 0.0
    %451 = vmatprep.subr.mxu0 0.0
    %452 = vmatpush1.msra.mxu0 0.0
    %453 = vmatprep.subr.mxu0 0.0
    %454 = vmatpush1.msra.mxu0 0.0
    %455 = vmatprep.subr.mxu0 0.0
    %456 = vmatpush1.msra.mxu0 0.0
    %457 = vmatprep.subr.mxu0 0.0
    %458 = vmatpush1.msra.mxu0 0.0
    %459 = vmatprep.subr.mxu0 0.0
    %460 = vmatpush1.msra.mxu0 %v434
    %461 = vmatprep.subr.mxu0 0.0
    %462 = vmatpush1.msra.mxu0 %v433
    %463 = vmatprep.subr.mxu0 0.0
    %464 = vmatpush1.msra.mxu0 %v432
    %465 = vmatprep.subr.mxu0 0.0
    %466 = vmatpush1.msra.mxu0 %v431
    %467 = vmatprep.subr.mxu0 0.0
    %468 = vmatpush2.msra.mxu0 0.0
    %469 = vmatprep.subr.mxu0 0.0
    %470 = vmatpush2.msra.mxu0 0.0
    %471 = vmatprep.subr.mxu0 0.0
    %472 = vmatpush2.msra.mxu0 0.0
    %473 = vmatprep.subr.mxu0 0.0
    %474 = vmatpush2.msra.mxu0 0.0
    %475 = vmatprep.subr.mxu0 0.0
    %476 = vmatpush2.msra.mxu0 0.0
    %477 = vmatprep.subr.mxu0 0.0
    %478 = vmatpush2.msra.mxu0 0.0
    %479 = vmatprep.subr.mxu0 0.0
    %480 = vmatpush2.msra.mxu0 0.0
    %481 = vmatprep.subr.mxu0 0.0
    %482 = vmatpush2.msra.mxu0 0.0
    %483 = vmatprep.subr.mxu0 0.0
    %484 = vmatpush2.msra.mxu0 0.0
    %485 = vmatprep.subr.mxu0 0.0
    %486 = vmatpush2.msra.mxu0 0.0
    %487 = vmatprep.subr.mxu0 0.0
    %488 = vmatpush2.msra.mxu0 0.0
    %489 = vmatprep.subr.mxu0 0.0
    %490 = vmatpush2.msra.mxu0 0.0
    %491 = vmatprep.subr.mxu0 0.0
    %492 = vmatpush2.msra.mxu0 0.0
    %493 = vmatprep.subr.mxu0 0.0
    %494 = vmatpush2.msra.mxu0 0.0
    %495 = vmatprep.subr.mxu0 0.0
    %496 = vmatpush2.msra.mxu0 0.0
    %497 = vmatprep.subr.mxu0 0.0
    %498 = vmatpush2.msra.mxu0 0.0
    %499 = vmatprep.mubr.f32.mxu0 0.0
    %500 = vmatmul.mubr.f32.gmra.mxu0 %v69
    %v501 = vpop.f32.mrf.mxu0
    %v502 = vadd.f32 0.0, %v501
    %v503 = vpop.f32.mrf.mxu0
    %504 = vmatprep.mubr.f32.mxu0 0.0
    %505 = vmatmul.mubr.f32.gmra.mxu0 %v145
    %v506 = vpop.f32.mrf.mxu0
    %v507 = vadd.f32 0.0, %v506
    %v508 = vpop.f32.mrf.mxu0
    %509 = vdwg.mxu0
    %v511 = vsel %vm67, %v351, 0
    %v514 = vsel %vm67, %v424, 0
    %516 = vmatprep.subr.mxu0 0.0
    %517 = vmatpush1.msra.mxu0 0.0
    %518 = vmatprep.subr.mxu0 0.0
    %519 = vmatpush1.msra.mxu0 0.0
    %520 = vmatprep.subr.mxu0 0.0
    %521 = vmatpush1.msra.mxu0 0.0
    %522 = vmatprep.subr.mxu0 0.0
    %523 = vmatpush1.msra.mxu0 0.0
    %524 = vmatprep.subr.mxu0 0.0
    %525 = vmatpush1.msra.mxu0 0.0
    %526 = vmatprep.subr.mxu0 0.0
    %527 = vmatpush1.msra.mxu0 0.0
    %528 = vmatprep.subr.mxu0 0.0
    %529 = vmatpush1.msra.mxu0 0.0
    %530 = vmatprep.subr.mxu0 0.0
    %531 = vmatpush1.msra.mxu0 0.0
    %532 = vmatprep.subr.mxu0 0.0
    %533 = vmatpush1.msra.mxu0 0.0
    %534 = vmatprep.subr.mxu0 0.0
    %535 = vmatpush1.msra.mxu0 0.0
    %536 = vmatprep.subr.mxu0 0.0
    %537 = vmatpush1.msra.mxu0 0.0
    %538 = vmatprep.subr.mxu0 0.0
    %539 = vmatpush1.msra.mxu0 0.0
    %540 = vmatprep.subr.mxu0 0.0
    %541 = vmatpush1.msra.mxu0 %v430
    %542 = vmatprep.subr.mxu0 0.0
    %543 = vmatpush1.msra.mxu0 %v429
    %544 = vmatprep.subr.mxu0 0.0
    %545 = vmatpush1.msra.mxu0 %v428
    %546 = vmatprep.subr.mxu0 0.0
    %547 = vmatpush1.msra.mxu0 %v427
    %548 = vmatprep.subr.mxu0 0.0
    %549 = vmatpush2.msra.mxu0 0.0
    %550 = vmatprep.subr.mxu0 0.0
    %551 = vmatpush2.msra.mxu0 0.0
    %552 = vmatprep.subr.mxu0 0.0
    %553 = vmatpush2.msra.mxu0 0.0
    %554 = vmatprep.subr.mxu0 0.0
    %555 = vmatpush2.msra.mxu0 0.0
    %556 = vmatprep.subr.mxu0 0.0
    %557 = vmatpush2.msra.mxu0 0.0
    %558 = vmatprep.subr.mxu0 0.0
    %559 = vmatpush2.msra.mxu0 0.0
    %560 = vmatprep.subr.mxu0 0.0
    %561 = vmatpush2.msra.mxu0 0.0
    %562 = vmatprep.subr.mxu0 0.0
    %563 = vmatpush2.msra.mxu0 0.0
    %564 = vmatprep.subr.mxu0 0.0
    %565 = vmatpush2.msra.mxu0 0.0
    %566 = vmatprep.subr.mxu0 0.0
    %567 = vmatpush2.msra.mxu0 0.0
    %568 = vmatprep.subr.mxu0 0.0
    %569 = vmatpush2.msra.mxu0 0.0
    %570 = vmatprep.subr.mxu0 0.0
    %571 = vmatpush2.msra.mxu0 0.0
    %572 = vmatprep.subr.mxu0 0.0
    %573 = vmatpush2.msra.mxu0 0.0
    %574 = vmatprep.subr.mxu0 0.0
    %575 = vmatpush2.msra.mxu0 0.0
    %576 = vmatprep.subr.mxu0 0.0
    %577 = vmatpush2.msra.mxu0 0.0
    %578 = vmatprep.subr.mxu0 0.0
    %579 = vmatpush2.msra.mxu0 0.0
    %580 = vmatprep.mubr.f32.mxu0 0.0
    %581 = vmatmul.mubr.f32.gmra.mxu0 %v511
    %v582 = vpop.f32.mrf.mxu0
    %v583 = vadd.f32 %v502, %v582
    %v584 = vpop.f32.mrf.mxu0
    %585 = vmatprep.mubr.f32.mxu0 0.0
    %586 = vmatmul.mubr.f32.gmra.mxu0 %v514
    %v587 = vpop.f32.mrf.mxu0
    %v588 = vadd.f32 %v507, %v587
    %v589 = vpop.f32.mrf.mxu0
    %590 = vdwg.mxu0
    %v591 = vld [vmem:[%s4] sm:$0x1]
    %v593 = vlaneseq
    %v594 = vshrl.u32 %v593, 7
    %v595 = vsub.s32 0, %v594
    %v596 = vrot.slane %v591, %v595
    %v598 = vadd.f32 %v583, %v596
    %v599 = vadd.f32 %v588, %v596
    %600 = vst [vmem:[#allocation8] sm:$0xff] %v598
    %601 = vst [vmem:[#allocation8 + $0x8] sm:$0xff] %v599
    // Predicated region
    $region34: #{tpu_custom_call.1} parent=1 // pred_check
      _
    $region35: #{tpu_custom_call.1} parent=1 // pred_check_branch
      %603 = sbr.rel (0) target = $region37
    $region36: #{tpu_custom_call.1} parent=1 // pred_region
      %s605 = ssub.s32 256, 256
      %606 = vsyncadd [#allocation4], %s605
      %s607 = sshll.u32 [#allocation8], 4
      %s608 = int_to_ptr.vmem [resolvable:$true] %s607
      %613 = dma.vmem_to_hbm [thread:$0]  %s608, 256, %s5, [#allocation4], 128, 128, 8
    $region37: #{tpu_custom_call.1} parent=1 // pred_fallthru
      _
    // Predicated region
    $region38: #{tpu_custom_call.1} parent=1 // pred_check
      _
    $region39: #{tpu_custom_call.1} parent=1 // pred_check_branch
      %615 = sbr.rel (0) target = $region41
    $region40: #{tpu_custom_call.1} parent=1 // pred_region
      %616 = dma.done [#allocation4], 256
    $region41: #{tpu_custom_call.1} parent=1 // pred_fallthru
      _
    %617 = vsyncpa [#allocation3], 1
    %618 = vsyncpa [#allocation6], 1
    %619 = vsyncpa [#allocation4], 1

</llo_original>
